<compile_context>
chip_gen: v6e
topology: v6e:2x2x1
jax: 0.10.0
libtpu: 0.0.40
codegen_flags: <defaults>
</compile_context>

<pallas_src>
import math
import functools

import jax
import jax.numpy as jnp
from jax.experimental import pallas as pl
from jax.experimental.pallas import tpu as pltpu


def make_pos_embedding(d_model: int, maxlen: int = 5000) -> jnp.ndarray:
    """(maxlen, 1, d_model) sinusoidal table, matching the PyTorch module.

    NOTE: the reference module uses math.log(1000) (not the more common
    10000); we keep log(1000) to match its forward semantics exactly.
    """
    assert d_model % 2 == 0, "d_model must be even (same limitation as the PyTorch module)"
    den = jnp.exp(-jnp.arange(0, d_model, 2, dtype=jnp.float32)
                  * (math.log(1000.0) / d_model))
    pos = jnp.arange(0, maxlen, dtype=jnp.float32).reshape(maxlen, 1)
    angles = pos * den                                   # (maxlen, d_model//2)
    pe = jnp.zeros((maxlen, d_model), dtype=jnp.float32)
    pe = pe.at[:, 0::2].set(jnp.sin(angles))
    pe = pe.at[:, 1::2].set(jnp.cos(angles))
    return pe[:, None, :]                                # (maxlen, 1, d_model)


def _broadcast_pos(pos, n_batch):
    # pos: (tS, D) -> (tS, B*D); row-major (tS, B, D)->(tS, B*D) layout means
    # the positional row simply repeats B times along the lane axis.
    if n_batch == 1:
        return pos
    return jnp.concatenate([pos] * n_batch, axis=-1)


def _pe_add_kernel(x_ref, pos_ref, o_ref, *, n_batch):
    # x_ref/o_ref: (tS, B*D)   pos_ref: (tS, D)
    o_ref[...] = x_ref[...] + _broadcast_pos(pos_ref[...], n_batch)


def _pe_add_dropout_kernel(x_ref, pos_ref, bits_ref, o_ref, *,
                           n_batch, keep_thresh, scale):
    y = x_ref[...] + _broadcast_pos(pos_ref[...], n_batch)
    # Inverted dropout via a pure integer-space test: drop iff bits < thresh.
    keep = bits_ref[...] >= jnp.uint32(keep_thresh)
    o_ref[...] = jnp.where(keep, y * jnp.asarray(scale, y.dtype),
                           jnp.zeros_like(y))


def _choose_row_tile(n_rows: int, row_bytes: int, target_block_bytes: int) -> int:
    """Rows per tile: multiple of 8, ~target_block_bytes per x-block, capped."""
    rows = max(1, target_block_bytes // max(row_bytes, 1))
    rows = max(8, (rows // 8) * 8)            # sublane multiple -> unmasked stores
    rows = min(rows, 1024)                    # 512-1024 rows already ~HBM roofline
    rows = min(rows, -(-n_rows // 8) * 8)     # never bigger than padded n_rows
    return int(rows)


def positional_encoding(token_embedding: jnp.ndarray,
                        pos_embedding: jnp.ndarray,
                        *,
                        dropout_p: float = 0.0,
                        rng_key=None) -> jnp.ndarray:
    """token_embedding: (S, B, D);  pos_embedding: (maxlen, 1, D)."""
    S, B, D = token_embedding.shape
    dtype = token_embedding.dtype
    BD = B * D

    use_dropout = float(dropout_p) > 0.0
    if use_dropout:
        if not (0.0 < dropout_p < 1.0):
            raise ValueError("dropout_p must be in [0, 1)")
        if rng_key is None:
            raise ValueError("rng_key is required when dropout_p > 0")

    # Lane-dense 2-D views (free, row-major reshapes).
    x2 = token_embedding.reshape(S, BD)
    pos2 = pos_embedding[:S].reshape(S, D).astype(dtype)

    # Tile the sequence axis so Pallas double-buffers DMA against the VPU add.
    # Budget ~12 MiB of double-buffered VMEM across the streamed arrays, which
    # fits the scoped-VMEM defaults of v5e (16 MiB) and v7x (32 of 64 MiB).
    n_streams = 3 if use_dropout else 2        # x, (bits), out; pos is ~1/B extra
    block_bytes = (12 * 1024 * 1024) // (2 * n_streams)
    row_bytes = BD * jnp.dtype(dtype).itemsize
    tS = _choose_row_tile(S, row_bytes, block_bytes)

    # Pad the ragged tail so every tile is full and stores stay unmasked.
    S_pad = -(-S // tS) * tS
    if S_pad != S:
        x2 = jnp.pad(x2, ((0, S_pad - S), (0, 0)))
        pos2 = jnp.pad(pos2, ((0, S_pad - S), (0, 0)))

    grid = (S_pad // tS,)
    compiler_params = pltpu.CompilerParams(
        dimension_semantics=("parallel",),          # tiles independent -> megacore on v7x
        vmem_limit_bytes=32 * 1024 * 1024,
    )

    x_spec = pl.BlockSpec((tS, BD), lambda i: (i, 0))
    pos_spec = pl.BlockSpec((tS, D), lambda i: (i, 0))
    out_spec = pl.BlockSpec((tS, BD), lambda i: (i, 0))
    out_shape = jax.ShapeDtypeStruct((S_pad, BD), dtype)

    if not use_dropout:
        kernel = functools.partial(_pe_add_kernel, n_batch=B)
        out2 = pl.pallas_call(
            kernel,
            out_shape=out_shape,
            grid=grid,
            in_specs=[x_spec, pos_spec],
            out_specs=out_spec,
            compiler_params=compiler_params,
        )(x2, pos2)
    else:
        # Portable randomness: the TPU stateful PRNG (pltpu.prng_seed) has no
        # CPU/interpret lowering, so draw uint32 bits with jax.random instead.
        bits = jax.random.bits(rng_key, (S_pad, BD), dtype=jnp.uint32)
        keep_thresh = min(int(round(float(dropout_p) * 2.0 ** 32)), 2 ** 32 - 1)
        scale = 1.0 / (1.0 - float(dropout_p))
        kernel = functools.partial(_pe_add_dropout_kernel, n_batch=B,
                                   keep_thresh=keep_thresh, scale=scale)
        out2 = pl.pallas_call(
            kernel,
            out_shape=out_shape,
            grid=grid,
            in_specs=[x_spec, pos_spec, x_spec],
            out_specs=out_spec,
            compiler_params=compiler_params,
        )(x2, pos2, bits)

    return out2[:S].reshape(S, B, D)


if __name__ == "__main__":
    S, B, D = 8, 2, 32
    maxlen = 64  # small synthetic table (module default is 5000)

    key = jax.random.PRNGKey(0)
    kx, kd = jax.random.split(key)
    x = jax.random.normal(kx, (S, B, D), dtype=jnp.float32)
    pe_table = make_pos_embedding(D, maxlen)
    ref = x + pe_table[:S]

    # Eval-mode (dropout off): exact add semantics.
    out_eval = positional_encoding(x, pe_table, dropout_p=0.0)
    out_eval = jax.block_until_ready(out_eval)
    assert out_eval.shape == (S, B, D)
    assert jnp.allclose(out_eval, ref, atol=1e-6), "mismatch vs reference add (eval mode)"

    # Training-mode dropout: every element is either 0 or ref * 1/(1-p).
    p = 0.1
    out_train = positional_encoding(x, pe_table, dropout_p=p, rng_key=kd)
    out_train = jax.block_until_ready(out_train)
    assert out_train.shape == (S, B, D)
    scale = 1.0 / (1.0 - p)
    kept = jnp.isclose(out_train, ref * scale, atol=1e-5)
    dropped = (out_train == 0.0)
    assert bool(jnp.all(kept | dropped)), "dropout output is not {0, scaled} per element"

    print("KERNEL_OK")
</pallas_src>

<mosaic_0001>
module attributes {stable_mosaic.version = 11 : i64} {
  func.func @_pe_add_kernel(%arg0: i32, %arg1: memref<8x64xf32, #tpu.memory_space<vmem>>, %arg2: memref<8x32xf32, #tpu.memory_space<vmem>>, %arg3: memref<8x64xf32, #tpu.memory_space<vmem>>) attributes {dimension_semantics = [#tpu.dimension_semantics<parallel>], iteration_bounds = array<i64: 1>, scalar_prefetch = 0 : i64, scratch_operands = 0 : i64, tpu.core_type = #tpu.core_type<tc>, window_params = [{transform_indices = @transform_0, window_bounds = array<i64: 8, 64>}, {transform_indices = @transform_1, window_bounds = array<i64: 8, 32>}, {transform_indices = @transform_2, window_bounds = array<i64: 8, 64>}]} {
    %c0 = arith.constant 0 : index
    %c0_0 = arith.constant 0 : index
    %0 = vector.load %arg1[%c0, %c0_0] : memref<8x64xf32, #tpu.memory_space<vmem>>, vector<8x64xf32>
    %c0_1 = arith.constant 0 : index
    %c0_2 = arith.constant 0 : index
    %1 = vector.load %arg2[%c0_1, %c0_2] : memref<8x32xf32, #tpu.memory_space<vmem>>, vector<8x32xf32>
    %2 = tpu.concatenate %1, %1 in 1 : vector<8x32xf32>, vector<8x32xf32> -> vector<8x64xf32>
    %3 = arith.addf %0, %2 : vector<8x64xf32>
    %c0_3 = arith.constant 0 : index
    %c0_4 = arith.constant 0 : index
    %4 = vector.load %arg3[%c0_3, %c0_4] : memref<8x64xf32, #tpu.memory_space<vmem>>, vector<8x64xf32>
    tpu.vector_store %arg3[%c0_3, %c0_4], %3 {strides = array<i32>} : memref<8x64xf32, #tpu.memory_space<vmem>>, vector<8x64xf32>,
    return
  }
  func.func @transform_0(%arg0: i32) -> (i32, i32) {
    %c0_i32 = arith.constant 0 : i32
    %c0_i32_0 = arith.constant 0 : i32
    return %arg0, %c0_i32 : i32, i32
  }
  func.func @transform_1(%arg0: i32) -> (i32, i32) {
    %c0_i32 = arith.constant 0 : i32
    %c0_i32_0 = arith.constant 0 : i32
    return %arg0, %c0_i32 : i32, i32
  }
  func.func @transform_2(%arg0: i32) -> (i32, i32) {
    %c0_i32 = arith.constant 0 : i32
    %c0_i32_0 = arith.constant 0 : i32
    return %arg0, %c0_i32 : i32, i32
  }
}

</mosaic_0001>

<llo_original>
// kernel: tpu_custom_call.1
$region0: #{tpu_custom_call.1}
  #allocation0 [shape = 'u32[]', space=smem, size = 0x4, offset = 0x4, fixed_abs, tag = 'smem constant byte address 0x4 - core index']
  #allocation1 [shape = 'u32[144,128]{1,0:T(1,128)}', space=vmem, size = 0x12000, scoped, tag = 'internal scratch']
  %s0 = inlined_call_operand.hbm [shape: f32[8,64], index: 0, kind: input, shape index: {}]
  %s1 = inlined_call_operand.hbm [shape: f32[8,32], index: 1, kind: input, shape index: {}]
  %s2 = inlined_call_operand.hbm [shape: f32[8,64], index: 2, kind: output, shape index: {}]
  %s3 = sld [smem:[#allocation0]]
  $region26: #{tpu_custom_call.1} parent=0
    _
  %s5 = ssub.s32 1, %s3
  %s6 = scalar_select 0, %s5, %s3
  $region1: #{tpu_custom_call.1} parent=0
    #allocation2 [shape = 'u8[4096]{0}', space=vmem, size = 0x1000, scoped, tag = 'input window, operand 0, single buffered']
    #allocation3 [shape = 's32[1]{0}', space=sflag, size = 0x4, scoped, tag = 'scoped memory for tpu_custom_call.1']
    #allocation4 [shape = 's32[1]{0}', space=sflag, size = 0x4, scoped, tag = 'scoped memory for tpu_custom_call.1']
    #allocation5 [shape = 'u8[4096]{0}', space=vmem, size = 0x1000, scoped, tag = 'input window, operand 1, single buffered']
    #allocation6 [shape = 's32[1]{0}', space=sflag, size = 0x4, scoped, tag = 'scoped memory for tpu_custom_call.1']
    #allocation7 [shape = 'u8[4096]{0}', space=vmem, size = 0x1000, scoped, tag = 'output window, operand 0, single buffered']
    %7 = vsyncpa [#allocation3], 0
    %8 = vsyncpa [#allocation6], 0
    %9 = vsyncpa [#allocation4], 0
    // Predicated region
    $region2: #{tpu_custom_call.1} parent=1 // pred_check
      _
    $region3: #{tpu_custom_call.1} parent=1 // pred_check_branch
      %11 = sbr.rel (0) target = $region5
    $region4: #{tpu_custom_call.1} parent=1 // pred_region
      %s13 = ssub.s32 128, 128
      %14 = vsyncadd [#allocation3], %s13
      %s16 = sshll.u32 [#allocation2], 4
      %s17 = int_to_ptr.vmem [resolvable:$true] %s16
      %19 = dma.hbm_to_vmem [thread:$0]  %s0, 128, %s17, [#allocation3]
    $region5: #{tpu_custom_call.1} parent=1 // pred_fallthru
      _
    // Predicated region
    $region6: #{tpu_custom_call.1} parent=1 // pred_check
      _
    $region7: #{tpu_custom_call.1} parent=1 // pred_check_branch
      %21 = sbr.rel (0) target = $region9
    $region8: #{tpu_custom_call.1} parent=1 // pred_region
      %s23 = ssub.s32 128, 128
      %24 = vsyncadd [#allocation6], %s23
      %s26 = sshll.u32 [#allocation5], 4
      %s27 = int_to_ptr.vmem [resolvable:$true] %s26
      %29 = dma.hbm_to_vmem [thread:$0]  %s1, 128, %s27, [#allocation6]
    $region9: #{tpu_custom_call.1} parent=1 // pred_fallthru
      _
    // Predicated region
    $region10: #{tpu_custom_call.1} parent=1 // pred_check
      _
    $region11: #{tpu_custom_call.1} parent=1 // pred_check_branch
      %31 = sbr.rel (0) target = $region13
    $region12: #{tpu_custom_call.1} parent=1 // pred_region
      %32 = dma.done [#allocation3], 128
    $region13: #{tpu_custom_call.1} parent=1 // pred_fallthru
      _
    // Predicated region
    $region14: #{tpu_custom_call.1} parent=1 // pred_check
      _
    $region15: #{tpu_custom_call.1} parent=1 // pred_check_branch
      %34 = sbr.rel (0) target = $region17
    $region16: #{tpu_custom_call.1} parent=1 // pred_region
      %35 = dma.done [#allocation6], 128
    $region17: #{tpu_custom_call.1} parent=1 // pred_fallthru
      _
    %v36 = vld [vmem:[#allocation2] sm:$0xff]
    %v37 = vld [vmem:[#allocation5] sm:$0xff]
    %39 = vrot.lane.b32.xlu0 %v37, 32
    %v40 = vpop.permute.xlu0 %39
    %vm42 = vcmask 261120
    %v43 = vsel %vm42, %v37, %v40
    %v44 = vadd.f32 %v36, %v43
    %vm45 = vcmask 523264
    %46 = vst.msk [vmem:[#allocation7] sm:$0xff] %vm45, %v44
    // Predicated region
    $region18: #{tpu_custom_call.1} parent=1 // pred_check
      _
    $region19: #{tpu_custom_call.1} parent=1 // pred_check_branch
      %48 = sbr.rel (0) target = $region21
    $region20: #{tpu_custom_call.1} parent=1 // pred_region
      %s50 = ssub.s32 128, 128
      %51 = vsyncadd [#allocation4], %s50
      %s53 = sshll.u32 [#allocation7], 4
      %s54 = int_to_ptr.vmem [resolvable:$true] %s53
      %56 = dma.vmem_to_hbm [thread:$0]  %s54, 128, %s2, [#allocation4]
    $region21: #{tpu_custom_call.1} parent=1 // pred_fallthru
      _
    // Predicated region
    $region22: #{tpu_custom_call.1} parent=1 // pred_check
      _
    $region23: #{tpu_custom_call.1} parent=1 // pred_check_branch
      %58 = sbr.rel (0) target = $region25
    $region24: #{tpu_custom_call.1} parent=1 // pred_region
      %59 = dma.done [#allocation4], 128
    $region25: #{tpu_custom_call.1} parent=1 // pred_fallthru
      _
    %60 = vsyncpa [#allocation3], 1
    %61 = vsyncpa [#allocation6], 1
    %62 = vsyncpa [#allocation4], 1

</llo_original>
